<compile_context>
chip_gen: v5e
topology: v5e:2x2
jax: 0.10.0
libtpu: 0.0.40
codegen_flags: <defaults>
</compile_context>

<pallas_src>
import functools

import jax
import jax.numpy as jnp
from jax.experimental import pallas as pl
from jax.experimental.pallas import tpu as pltpu


# ----------------------------------------------------------------------------
# Kernel 1: per-sample interpolation  out = alpha * real + (1 - alpha) * fake
# ----------------------------------------------------------------------------
def _interp_kernel(alpha_ref, real_ref, fake_ref, out_ref):
    a = alpha_ref[...]                      # (B, 1) per-sample scalar, lane-broadcast
    out_ref[...] = a * real_ref[...] + (1.0 - a) * fake_ref[...]


def interpolate_pallas(real, fake, alpha, *, vmem_budget_bytes=4 << 20):
    """real, fake: (B, C, H, W); alpha: (B,). Returns interpolated (B, C, H, W)."""
    B, C, H, W = real.shape
    L = C * H * W
    real2 = real.reshape(B, L)              # free reshape (NCHW is contiguous)
    fake2 = fake.reshape(B, L)
    alpha2 = alpha.reshape(B, 1).astype(real.dtype)

    itemsize = jnp.dtype(real.dtype).itemsize
    if L % 128 == 0:
        # Largest 128-multiple divisor of L under the per-block VMEM budget.
        max_l = max(128, (vmem_budget_bytes // (B * itemsize)) // 128 * 128)
        tile_l = min(L, max_l)
        while L % tile_l != 0:
            tile_l -= 128
    else:
        # TODO(synk): ragged last dim — fall back to one full-width block
        # instead of a masked tail tile.
        tile_l = L
    grid = (L // tile_l,)

    out = pl.pallas_call(
        _interp_kernel,
        out_shape=jax.ShapeDtypeStruct((B, L), real.dtype),
        grid_spec=pltpu.PrefetchScalarGridSpec(
            num_scalar_prefetch=0,
            grid=grid,
            in_specs=[
                pl.BlockSpec((B, 1), lambda j: (0, 0)),
                pl.BlockSpec((B, tile_l), lambda j: (0, j)),
                pl.BlockSpec((B, tile_l), lambda j: (0, j)),
            ],
            out_specs=pl.BlockSpec((B, tile_l), lambda j: (0, j)),
        ),
        compiler_params=pltpu.CompilerParams(
            dimension_semantics=("parallel",),
            vmem_limit_bytes=48 << 20,
        ),
    )(alpha2, real2, fake2)
    return out.reshape(B, C, H, W)


# ----------------------------------------------------------------------------
# Kernel 2: gradient penalty  lambda_gp * mean_b((||grad_b|| - 1)^2)
# ----------------------------------------------------------------------------
def _gp_kernel(grad_ref, out_ref, acc_ref, *, lambda_gp, n_b):
    j = pl.program_id(0)

    @pl.when(j == 0)
    def _():
        acc_ref[...] = jnp.zeros_like(acc_ref)

    x = grad_ref[...].astype(jnp.float32)          # (B, tile_r, 128)
    # Per-lane partial sums of grad^2; only a sublane-direction fold per step.
    # The expensive cross-lane reduce is deferred to the epilogue.
    acc_ref[...] += jnp.sum(x * x, axis=1)         # -> (B, 128)

    @pl.when(j == pl.num_programs(0) - 1)
    def _():
        sumsq = jnp.sum(acc_ref[...], axis=1, keepdims=True)   # (B, 1)
        norm = jnp.sqrt(sumsq)
        d = norm - 1.0
        out_ref[0, 0] = (lambda_gp / n_b) * jnp.sum(d * d)


def gradient_penalty_pallas(grad, lambda_gp, *, vmem_budget_bytes=8 << 20):
    """grad: (B, C, H, W) gradient of D wrt interpolated input. Returns scalar f32."""
    B = grad.shape[0]
    g = grad.reshape(B, -1).astype(jnp.float32)
    L = g.shape[1]
    pad = (-L) % 128
    if pad:
        # zero padding does not change the sum of squares
        g = jnp.pad(g, ((0, 0), (0, pad)))
    R = g.shape[1] // 128
    g3 = g.reshape(B, R, 128)                      # lane-dense view, free reshape

    if R % 8 == 0:
        row_bytes = B * 128 * 4
        max_r = max(8, (vmem_budget_bytes // row_bytes) // 8 * 8)
        tile_r = min(R, max_r)
        while R % tile_r != 0:
            tile_r -= 8
    else:
        tile_r = R
    grid = (R // tile_r,)

    kernel = functools.partial(_gp_kernel, lambda_gp=float(lambda_gp), n_b=B)

    out = pl.pallas_call(
        kernel,
        out_shape=jax.ShapeDtypeStruct((1, 1), jnp.float32),
        grid_spec=pltpu.PrefetchScalarGridSpec(
            num_scalar_prefetch=0,
            grid=grid,
            in_specs=[pl.BlockSpec((B, tile_r, 128), lambda j: (0, j, 0))],
            out_specs=pl.BlockSpec((1, 1), lambda j: (0, 0)),
            scratch_shapes=[pltpu.VMEM((B, 128), jnp.float32)],
        ),
        compiler_params=pltpu.CompilerParams(
            dimension_semantics=("arbitrary",),
            vmem_limit_bytes=48 << 20,
        ),
    )(g3)
    return out[0, 0]


# ----------------------------------------------------------------------------
# Full module forward
# ----------------------------------------------------------------------------
def criterion_additional_gp(d_net, d_in_S, d_in_T, lambda_gp, alpha):
    """JAX/Pallas forward of CriterionAdditionalGP.

    d_net(x) must return a tuple whose first element is the discriminator
    output (like the PyTorch D).  alpha is the per-sample U[0,1) draw
    (torch.rand(B,1,1,1) in the original module).
    """
    assert d_in_S.shape == d_in_T.shape, \
        'the output dim of D with teacher and student as input differ'
    real, fake = d_in_T, d_in_S

    interpolated = interpolate_pallas(real, fake, alpha)

    # TODO(synk): the discriminator forward + torch.autograd.grad have no clean
    # Pallas equivalent for an arbitrary external network; computed with jax.vjp.
    out0, vjp_fn = jax.vjp(lambda z: d_net(z)[0], interpolated)
    (grad,) = vjp_fn(jnp.ones_like(out0))

    return gradient_penalty_pallas(grad, lambda_gp)


# ----------------------------------------------------------------------------
# Pure-JAX reference
# ----------------------------------------------------------------------------
def _reference_gp(d_net, d_in_S, d_in_T, lambda_gp, alpha):
    real, fake = d_in_T, d_in_S
    B = real.shape[0]
    a = alpha.reshape(B, 1, 1, 1)
    interp = a * real + (1.0 - a) * fake
    out0, vjp_fn = jax.vjp(lambda z: d_net(z)[0], interp)
    (grad,) = vjp_fn(jnp.ones_like(out0))
    g = grad.reshape(B, -1)
    gnorm = jnp.sqrt(jnp.sum(g ** 2, axis=1))
    return lambda_gp * jnp.mean((gnorm - 1.0) ** 2)


if __name__ == "__main__":
    key = jax.random.PRNGKey(0)
    k1, k2, k3, k4 = jax.random.split(key, 4)
    B, C, H, W = 2, 4, 16, 16

    d_in_S = jax.random.normal(k1, (B, C, H, W), dtype=jnp.float32)   # student
    d_in_T = jax.random.normal(k2, (B, C, H, W), dtype=jnp.float32)   # teacher

    # Small deterministic demo discriminator (stand-in for D_net).
    w = 0.1 * jax.random.normal(k3, (C, H, W), dtype=jnp.float32)
    b = jnp.zeros((1,), jnp.float32)

    def d_net(x):
        score = jnp.einsum('bchw,chw->b', jnp.tanh(x), w)[:, None] + b
        return (score,)

    lambda_gp = 10.0
    alpha = jax.random.uniform(k4, (B,), dtype=jnp.float32)   # torch.rand(B,1,1,1)

    loss = criterion_additional_gp(d_net, d_in_S, d_in_T, lambda_gp, alpha)
    loss = jax.block_until_ready(loss)

    ref = _reference_gp(d_net, d_in_S, d_in_T, lambda_gp, alpha)
    assert jnp.allclose(loss, ref, rtol=1e-5, atol=1e-6), (loss, ref)
    print("KERNEL_OK")
</pallas_src>

<mosaic_0001>
module attributes {stable_mosaic.version = 11 : i64} {
  func.func @_interp_kernel(%arg0: i32, %arg1: memref<2x1xf32, #tpu.memory_space<vmem>>, %arg2: memref<2x1024xf32, #tpu.memory_space<vmem>>, %arg3: memref<2x1024xf32, #tpu.memory_space<vmem>>, %arg4: memref<2x1024xf32, #tpu.memory_space<vmem>>) attributes {dimension_semantics = [#tpu.dimension_semantics<parallel>], iteration_bounds = array<i64: 1>, scalar_prefetch = 0 : i64, scratch_operands = 0 : i64, tpu.core_type = #tpu.core_type<tc>, window_params = [{pipeline_mode = #tpu.pipeline_mode<synchronous>, transform_indices = @transform_0, window_bounds = array<i64: 2, 1>}, {transform_indices = @transform_1, window_bounds = array<i64: 2, 1024>}, {transform_indices = @transform_2, window_bounds = array<i64: 2, 1024>}, {transform_indices = @transform_3, window_bounds = array<i64: 2, 1024>}]} {
    %c0 = arith.constant 0 : index
    %c0_0 = arith.constant 0 : index
    %0 = vector.load %arg1[%c0, %c0_0] : memref<2x1xf32, #tpu.memory_space<vmem>>, vector<2x1xf32>
    %c0_1 = arith.constant 0 : index
    %c0_2 = arith.constant 0 : index
    %1 = vector.load %arg2[%c0_1, %c0_2] : memref<2x1024xf32, #tpu.memory_space<vmem>>, vector<2x1024xf32>
    %2 = vector.broadcast %0 : vector<2x1xf32> to vector<2x1024xf32>
    %3 = arith.mulf %2, %1 : vector<2x1024xf32>
    %cst = arith.constant 1.000000e+00 : f32
    %4 = vector.broadcast %cst : f32 to vector<2x1xf32>
    %5 = arith.subf %4, %0 : vector<2x1xf32>
    %c0_3 = arith.constant 0 : index
    %c0_4 = arith.constant 0 : index
    %6 = vector.load %arg3[%c0_3, %c0_4] : memref<2x1024xf32, #tpu.memory_space<vmem>>, vector<2x1024xf32>
    %7 = vector.broadcast %5 : vector<2x1xf32> to vector<2x1024xf32>
    %8 = arith.mulf %7, %6 : vector<2x1024xf32>
    %9 = arith.addf %3, %8 : vector<2x1024xf32>
    %c0_5 = arith.constant 0 : index
    %c0_6 = arith.constant 0 : index
    %10 = vector.load %arg4[%c0_5, %c0_6] : memref<2x1024xf32, #tpu.memory_space<vmem>>, vector<2x1024xf32>
    tpu.vector_store %arg4[%c0_5, %c0_6], %9 {strides = array<i32>} : memref<2x1024xf32, #tpu.memory_space<vmem>>, vector<2x1024xf32>,
    return
  }
  func.func @transform_0(%arg0: i32) -> (i32, i32) {
    %c0_i32 = arith.constant 0 : i32
    %c0_i32_0 = arith.constant 0 : i32
    %c0_i32_1 = arith.constant 0 : i32
    return %c0_i32, %c0_i32_0 : i32, i32
  }
  func.func @transform_1(%arg0: i32) -> (i32, i32) {
    %c0_i32 = arith.constant 0 : i32
    %c0_i32_0 = arith.constant 0 : i32
    return %c0_i32, %arg0 : i32, i32
  }
  func.func @transform_2(%arg0: i32) -> (i32, i32) {
    %c0_i32 = arith.constant 0 : i32
    %c0_i32_0 = arith.constant 0 : i32
    return %c0_i32, %arg0 : i32, i32
  }
  func.func @transform_3(%arg0: i32) -> (i32, i32) {
    %c0_i32 = arith.constant 0 : i32
    %c0_i32_0 = arith.constant 0 : i32
    return %c0_i32, %arg0 : i32, i32
  }
}

</mosaic_0001>

<llo_original>
// kernel: tpu_custom_call.1
$region0: #{tpu_custom_call.1}
  #allocation0 [shape = 'u32[]', space=smem, size = 0x4, offset = 0x4, fixed_abs, tag = 'smem constant byte address 0x4 - core index']
  #allocation1 [shape = 'u32[72,128]{1,0:T(1,128)}', space=vmem, size = 0x9000, scoped, tag = 'internal scratch']
  %s0 = inlined_call_operand.vmem [shape: f32[2,1], index: 0, kind: input, shape index: {}]
  %s1 = inlined_call_operand.hbm [shape: f32[2,1024], index: 1, kind: input, shape index: {}]
  %s2 = inlined_call_operand.hbm [shape: f32[2,1024], index: 2, kind: input, shape index: {}]
  %s3 = inlined_call_operand.hbm [shape: f32[2,1024], index: 3, kind: output, shape index: {}]
  %s4 = sld [smem:[#allocation0]]
  $region30: #{tpu_custom_call.1} parent=0
    _
  %s6 = ssub.s32 1, %s4
  %s7 = scalar_select 0, %s6, %s4
  $region1: #{tpu_custom_call.1} parent=0
    #allocation2 [shape = 'u8[8192]{0}', space=vmem, size = 0x2000, scoped, tag = 'input window, operand 1, single buffered']
    #allocation3 [shape = 's32[1]{0}', space=sflag, size = 0x4, scoped, tag = 'scoped memory for tpu_custom_call.1']
    #allocation4 [shape = 's32[1]{0}', space=sflag, size = 0x4, scoped, tag = 'scoped memory for tpu_custom_call.1']
    #allocation5 [shape = 'u8[8192]{0}', space=vmem, size = 0x2000, scoped, tag = 'input window, operand 2, single buffered']
    #allocation6 [shape = 's32[1]{0}', space=sflag, size = 0x4, scoped, tag = 'scoped memory for tpu_custom_call.1']
    #allocation7 [shape = 'u8[8192]{0}', space=vmem, size = 0x2000, scoped, tag = 'output window, operand 0, single buffered']
    %8 = vsyncpa [#allocation3], 0
    %9 = vsyncpa [#allocation6], 0
    %10 = vsyncpa [#allocation4], 0
    // Predicated region
    $region2: #{tpu_custom_call.1} parent=1 // pred_check
      _
    $region3: #{tpu_custom_call.1} parent=1 // pred_check_branch
      %12 = sbr.rel (0) target = $region5
    $region4: #{tpu_custom_call.1} parent=1 // pred_region
      _
    $region5: #{tpu_custom_call.1} parent=1 // pred_fallthru
      _
    // Predicated region
    $region6: #{tpu_custom_call.1} parent=1 // pred_check
      _
    $region7: #{tpu_custom_call.1} parent=1 // pred_check_branch
      %14 = sbr.rel (0) target = $region9
    $region8: #{tpu_custom_call.1} parent=1 // pred_region
      %16 = vsyncadd [#allocation3], 0
      %s18 = sshll.u32 %s1, 4
      %s19 = int_to_ptr.hbm [resolvable:$true] %s18
      %s20 = sshll.u32 [#allocation2], 4
      %s21 = int_to_ptr.vmem [resolvable:$true] %s20
      %23 = dma.hbm_to_vmem [thread:$0]  %s19, 256, %s21, [#allocation3]
    $region9: #{tpu_custom_call.1} parent=1 // pred_fallthru
      _
    // Predicated region
    $region10: #{tpu_custom_call.1} parent=1 // pred_check
      _
    $region11: #{tpu_custom_call.1} parent=1 // pred_check_branch
      %25 = sbr.rel (0) target = $region13
    $region12: #{tpu_custom_call.1} parent=1 // pred_region
      %27 = vsyncadd [#allocation6], 0
      %s29 = sshll.u32 %s2, 4
      %s30 = int_to_ptr.hbm [resolvable:$true] %s29
      %s31 = sshll.u32 [#allocation5], 4
      %s32 = int_to_ptr.vmem [resolvable:$true] %s31
      %34 = dma.hbm_to_vmem [thread:$0]  %s30, 256, %s32, [#allocation6]
    $region13: #{tpu_custom_call.1} parent=1 // pred_fallthru
      _
    // Predicated region
    $region14: #{tpu_custom_call.1} parent=1 // pred_check
      _
    $region15: #{tpu_custom_call.1} parent=1 // pred_check_branch
      %36 = sbr.rel (0) target = $region17
    $region16: #{tpu_custom_call.1} parent=1 // pred_region
      %38 = dma.done [#allocation3], 256
    $region17: #{tpu_custom_call.1} parent=1 // pred_fallthru
      _
    // Predicated region
    $region18: #{tpu_custom_call.1} parent=1 // pred_check
      _
    $region19: #{tpu_custom_call.1} parent=1 // pred_check_branch
      %40 = sbr.rel (0) target = $region21
    $region20: #{tpu_custom_call.1} parent=1 // pred_region
      %42 = dma.done [#allocation6], 256
    $region21: #{tpu_custom_call.1} parent=1 // pred_fallthru
      _
    %v43 = vld [vmem:[%s0] sm:$0x3]
    %v44 = vld [vmem:[#allocation2] sm:$0xff]
    %v45 = vld [vmem:[#allocation2 + $0x8] sm:$0xff]
    %47 = vset.pattern.permute.xlu0 0
    %48 = vperm.xlu0 %47, %v43
    %v49 = vpop.permute.xlu0 %48
    %53 = vst [vmem:[#allocation1] ss:$4 sm:$0xff] %v44
    %s54 = scalar_lea.vmem [#allocation1], 32
    %55 = vst [vmem:[%s54] ss:$4 sm:$0xff] %v45
    %v56 = vld.sshfl [vmem:[#allocation1] sm:$0xff pattern:$0x73625140]
    %v57 = vld.sshfl [vmem:[#allocation1 + $0x8] sm:$0xff pattern:$0x73625140]
    %v58 = vld.sshfl [vmem:[#allocation1 + $0x10] sm:$0xff pattern:$0x73625140]
    %v59 = vld.sshfl [vmem:[#allocation1 + $0x18] sm:$0xff pattern:$0x73625140]
    %v60 = vld.sshfl [vmem:[#allocation1 + $0x20] sm:$0xff pattern:$0x73625140]
    %v61 = vld.sshfl [vmem:[#allocation1 + $0x28] sm:$0xff pattern:$0x73625140]
    %v62 = vld.sshfl [vmem:[#allocation1 + $0x30] sm:$0xff pattern:$0x73625140]
    %v63 = vld.sshfl [vmem:[#allocation1 + $0x38] sm:$0xff pattern:$0x73625140]
    %v72 = vmul.f32 %v49, %v56
    %v73 = vmul.f32 %v49, %v57
    %v74 = vmul.f32 %v49, %v58
    %v75 = vmul.f32 %v49, %v59
    %v76 = vmul.f32 %v49, %v60
    %v77 = vmul.f32 %v49, %v61
    %v78 = vmul.f32 %v49, %v62
    %v79 = vmul.f32 %v49, %v63
    %v80 = vsub.f32 1.0, %v43
    %v81 = vld [vmem:[#allocation5] sm:$0xff]
    %v82 = vld [vmem:[#allocation5 + $0x8] sm:$0xff]
    %84 = vset.pattern.permute.xlu0 0
    %85 = vperm.xlu0 %84, %v80
    %v86 = vpop.permute.xlu0 %85
    %90 = vst [vmem:[#allocation1] ss:$4 sm:$0xff] %v81
    %s91 = scalar_lea.vmem [#allocation1], 32
    %92 = vst [vmem:[%s91] ss:$4 sm:$0xff] %v82
    %v93 = vld.sshfl [vmem:[#allocation1] sm:$0xff pattern:$0x73625140]
    %v94 = vld.sshfl [vmem:[#allocation1 + $0x8] sm:$0xff pattern:$0x73625140]
    %v95 = vld.sshfl [vmem:[#allocation1 + $0x10] sm:$0xff pattern:$0x73625140]
    %v96 = vld.sshfl [vmem:[#allocation1 + $0x18] sm:$0xff pattern:$0x73625140]
    %v97 = vld.sshfl [vmem:[#allocation1 + $0x20] sm:$0xff pattern:$0x73625140]
    %v98 = vld.sshfl [vmem:[#allocation1 + $0x28] sm:$0xff pattern:$0x73625140]
    %v99 = vld.sshfl [vmem:[#allocation1 + $0x30] sm:$0xff pattern:$0x73625140]
    %v100 = vld.sshfl [vmem:[#allocation1 + $0x38] sm:$0xff pattern:$0x73625140]
    %v109 = vmul.f32 %v86, %v93
    %v110 = vmul.f32 %v86, %v94
    %v111 = vmul.f32 %v86, %v95
    %v112 = vmul.f32 %v86, %v96
    %v113 = vmul.f32 %v86, %v97
    %v114 = vmul.f32 %v86, %v98
    %v115 = vmul.f32 %v86, %v99
    %v116 = vmul.f32 %v86, %v100
    %v117 = vadd.f32 %v72, %v109
    %v118 = vadd.f32 %v73, %v110
    %v119 = vadd.f32 %v74, %v111
    %v120 = vadd.f32 %v75, %v112
    %v121 = vadd.f32 %v76, %v113
    %v122 = vadd.f32 %v77, %v114
    %v123 = vadd.f32 %v78, %v115
    %v124 = vadd.f32 %v79, %v116
    %v133 = vrot.slane %v118, 6
    %v134 = vrot.slane %v119, 4
    %v135 = vrot.slane %v120, 2
    %v136 = vrot.slane %v122, 6
    %v137 = vrot.slane %v123, 4
    %v138 = vrot.slane %v124, 2
    %vm139 = vcmask 1041408
    %v140 = vsel %vm139, %v117, %v133
    %vm141 = vcmask 1045508
    %v142 = vsel %vm141, %v134, %v135
    %vm143 = vcmask 1043456
    %v144 = vsel %vm143, %v140, %v142
    %v145 = vsel %vm139, %v121, %v136
    %v146 = vsel %vm141, %v137, %v138
    %v147 = vsel %vm143, %v145, %v146
    %150 = vst [vmem:[#allocation7] sm:$0xff] %v144
    %151 = vst [vmem:[#allocation7 + $0x8] sm:$0xff] %v147
    // Predicated region
    $region22: #{tpu_custom_call.1} parent=1 // pred_check
      _
    $region23: #{tpu_custom_call.1} parent=1 // pred_check_branch
      %153 = sbr.rel (0) target = $region25
    $region24: #{tpu_custom_call.1} parent=1 // pred_region
      %155 = vsyncadd [#allocation4], 0
      %s157 = sshll.u32 [#allocation7], 4
      %s158 = int_to_ptr.vmem [resolvable:$true] %s157
      %s159 = sshll.u32 %s3, 4
      %s160 = int_to_ptr.hbm [resolvable:$true] %s159
      %162 = dma.vmem_to_hbm [thread:$0]  %s158, 256, %s160, [#allocation4]
    $region25: #{tpu_custom_call.1} parent=1 // pred_fallthru
      _
    // Predicated region
    $region26: #{tpu_custom_call.1} parent=1 // pred_check
      _
    $region27: #{tpu_custom_call.1} parent=1 // pred_check_branch
      %164 = sbr.rel (0) target = $region29
    $region28: #{tpu_custom_call.1} parent=1 // pred_region
      %166 = dma.done [#allocation4], 256
    $region29: #{tpu_custom_call.1} parent=1 // pred_fallthru
      _
    %167 = vsyncpa [#allocation3], 1
    %168 = vsyncpa [#allocation6], 1
    %169 = vsyncpa [#allocation4], 1

</llo_original>
